<compile_context>
chip_gen: v5e
topology: v5e:2x2
jax: 0.10.0
libtpu: 0.0.40
codegen_flags: <defaults>
</compile_context>

<pallas_src>
import jax
import jax.numpy as jnp
from jax import lax
from jax.experimental import pallas as pl
from jax.experimental.pallas import tpu as pltpu


# --------------------------------------------------------------------------- #
# Helpers
# --------------------------------------------------------------------------- #
def _round_up(v, m):
    return -(-v // m) * m


def _tile_candidates(n, max_tile):
    """Multiples of 128 that divide n (descending), capped at max_tile."""
    cands = [t for t in range(128, min(n, max_tile) + 1, 128) if n % t == 0]
    if not cands:
        cands = [n]
    return sorted(cands, reverse=True)


def _tpu_generation():
    """Return (vmem_capacity_bytes, tensorcores_per_chip, max C for f32 MXU ops)."""
    kind = ""
    try:
        kind = jax.devices()[0].device_kind.lower()
    except Exception:
        pass
    vmem = None
    try:
        vmem = int(pltpu.get_tpu_info().vmem_capacity_bytes)
    except Exception:
        vmem = None
    if "v7" in kind:
        cores, c_f32_max, dflt = 2, 192, 64 << 20
    elif "v6" in kind:
        cores, c_f32_max, dflt = 1, 448, 128 << 20
    elif "v5p" in kind or "v4" in kind:
        cores, c_f32_max, dflt = 2, 256, 128 << 20
    elif "v5" in kind:                      # v5e / v5 lite
        cores, c_f32_max, dflt = 1, 160, 128 << 20
    else:                                   # unknown -> conservative
        cores, c_f32_max, dflt = 1, 160, 64 << 20
    return (vmem if vmem else dflt), cores, c_f32_max


# --------------------------------------------------------------------------- #
# Kernels
# --------------------------------------------------------------------------- #
def _make_fused_kernel(nn_chunks, use_f32_mxu):
    """Fused Gram-accumulate + softmax + apply, x cached in VMEM.

    Grid axis 1 has 2*nn_chunks steps: steps [0, nn) stream x chunks from HBM,
    stash them in the cache scratch and accumulate energy; steps [nn, 2nn)
    read the cached chunks and write attn @ x + x. x is read from HBM once.
    """
    mxu_dtype = jnp.float32 if use_f32_mxu else jnp.bfloat16

    def kernel(gamma_ref, x_ref, out_ref, energy_ref, cache_ref):
        n = pl.program_id(1)

        @pl.when(n == 0)
        def _init():
            energy_ref[...] = jnp.zeros_like(energy_ref)

        @pl.when(n < nn_chunks)
        def _accumulate():
            xb = x_ref[...]                                   # (bt, C, tn) f32
            cache_ref[n] = xb                                 # keep f32 for residual
            xm = xb.astype(mxu_dtype)
            # energy += x_chunk @ x_chunk^T (contract over spatial axis, batch 0).
            energy_ref[...] += lax.dot_general(
                xm, xm,
                dimension_numbers=(((2,), (2,)), ((0,), (0,))),
                preferred_element_type=jnp.float32,
            )

        @pl.when(n == nn_chunks - 1)
        def _softmax():
            energy = energy_ref[...]                          # (bt, C, C) f32
            # softmax(rowmax(E) - E) == softmax(-E); stable form shifts by rowmin(E).
            e_min = jnp.min(energy, axis=-1, keepdims=True)
            p = jnp.exp(e_min - energy)
            denom = jnp.sum(p, axis=-1, keepdims=True)
            energy_ref[...] = p * (gamma_ref[0] / denom)      # gamma * softmax(-E)

        @pl.when(n >= nn_chunks)
        def _apply():
            c = n - nn_chunks
            xc = cache_ref[c]                                 # (bt, C, tn) f32
            ctx = lax.dot_general(
                energy_ref[...].astype(mxu_dtype),
                xc.astype(mxu_dtype),
                dimension_numbers=(((2,), (1,)), ((0,), (0,))),
                preferred_element_type=jnp.float32,
            )                                                 # (bt, C, tn) f32
            out_ref[...] = ctx + xc

    return kernel


def _make_energy_kernel(use_f32_mxu):
    """Fallback pass 1: accumulate energy directly into the resident attn output."""
    mxu_dtype = jnp.float32 if use_f32_mxu else jnp.bfloat16

    def kernel(gamma_ref, x_ref, attn_ref):
        n = pl.program_id(1)

        @pl.when(n == 0)
        def _init():
            attn_ref[...] = jnp.zeros_like(attn_ref)

        xm = x_ref[...].astype(mxu_dtype)
        attn_ref[...] += lax.dot_general(
            xm, xm,
            dimension_numbers=(((2,), (2,)), ((0,), (0,))),
            preferred_element_type=jnp.float32,
        )

        @pl.when(n == pl.num_programs(1) - 1)
        def _finalize():
            energy = attn_ref[...]
            e_min = jnp.min(energy, axis=-1, keepdims=True)
            p = jnp.exp(e_min - energy)
            denom = jnp.sum(p, axis=-1, keepdims=True)
            attn_ref[...] = p * (gamma_ref[0] / denom)

    return kernel


def _make_apply_kernel(use_f32_mxu):
    """Fallback pass 2: out_chunk = attn @ x_chunk + x_chunk (gamma already in attn)."""
    mxu_dtype = jnp.float32 if use_f32_mxu else jnp.bfloat16

    def kernel(attn_ref, x_ref, out_ref):
        x = x_ref[...]                                        # f32 residual path
        ctx = lax.dot_general(
            attn_ref[...].astype(mxu_dtype), x.astype(mxu_dtype),
            dimension_numbers=(((2,), (1,)), ((0,), (0,))),
            preferred_element_type=jnp.float32,
        )
        out_ref[...] = ctx + x

    return kernel


# --------------------------------------------------------------------------- #
# Wrapper
# --------------------------------------------------------------------------- #
def channel_attention(x, gamma):
    """x: (B, C, H, W) float32, gamma: (1,) float32 -> (B, C, H, W)."""
    B, C, H, W = x.shape
    N = H * W
    x_flat = x.reshape(B, C, N).astype(jnp.float32)
    gamma = jnp.asarray(gamma, jnp.float32).reshape(1)

    # Zero-pad the spatial axis to a lane multiple; exact for the Gram matrix
    # (padded columns contribute 0) and for the residual (padded output dropped).
    n_pad = _round_up(max(N, 128), 128)
    if n_pad != N:
        x_flat = jnp.pad(x_flat, ((0, 0), (0, 0), (0, n_pad - N)))

    vmem_cap, n_cores, c_f32_max = _tpu_generation()
    budget = (vmem_cap * 3) // 4          # e.g. ~96 MiB on v5e/v6e, ~48 MiB on v7x
    margin = 16 << 20                     # headroom for compiler-internal scratch
    use_f32 = C <= c_f32_max              # f32 MXU operands while it stays HBM-bound

    cs = _round_up(C, 8)                  # sublane padding of C
    cl = _round_up(C, 128)                # lane padding of the (C, C) tiles

    max_tile = 2048 if vmem_cap <= (64 << 20) else 4096
    tn_cands = _tile_candidates(n_pad, max_tile)

    # Keep >= 2 steps on the parallel batch axis when the chip has 2 TensorCores.
    max_bt = B if (n_cores == 1 or B < 2) else max(1, B // 2)
    max_bt = min(max_bt, 16)
    bt_cands = [d for d in range(max_bt, 0, -1) if B % d == 0]

    # ----------------------- fused single-pass path --------------------------
    def fused_bytes(bt, tn):
        return (bt * cs * n_pad * 4        # f32 x cache for the batch group
                + bt * cs * cl * 4         # energy / attention scratch
                + 2 * bt * cs * tn * 4     # streamed x blocks (double-buffered)
                + 2 * bt * cs * tn * 4)    # out blocks (double-buffered)

    fused_cfg = None
    for tn in tn_cands:
        for bt in bt_cands:
            if fused_bytes(bt, tn) <= budget - margin:
                fused_cfg = (bt, tn)
                break
        if fused_cfg is not None:
            break

    if fused_cfg is not None:
        bt, tn = fused_cfg
        nb, nn = B // bt, n_pad // tn
        vmem_limit = int(max(32 << 20, min(budget, fused_bytes(bt, tn) + margin)))

        out_flat = pl.pallas_call(
            _make_fused_kernel(nn, use_f32),
            out_shape=jax.ShapeDtypeStruct((B, C, n_pad), jnp.float32),
            grid_spec=pltpu.PrefetchScalarGridSpec(
                num_scalar_prefetch=0,
                grid=(nb, 2 * nn),
                in_specs=[
                    pl.BlockSpec(memory_space=pltpu.SMEM),           # gamma (1,)
                    # Phase 0 streams chunk n; phase 1 keeps the last chunk
                    # resident so no extra HBM reads are issued.
                    pl.BlockSpec((bt, C, tn),
                                 lambda b, n: (b, 0, jnp.minimum(n, nn - 1))),
                ],
                # Output block stays at chunk 0 through phase 0 (never written
                # back until it is filled in phase 1), then walks the chunks.
                out_specs=pl.BlockSpec((bt, C, tn),
                                       lambda b, n: (b, 0, jnp.maximum(n - nn, 0))),
                scratch_shapes=[
                    pltpu.VMEM((bt, C, C), jnp.float32),             # energy/attn
                    pltpu.VMEM((nn, bt, C, tn), jnp.float32),        # x cache
                ],
            ),
            compiler_params=pltpu.CompilerParams(
                dimension_semantics=("parallel", "arbitrary"),
                vmem_limit_bytes=vmem_limit,
            ),
        )(gamma, x_flat)

    # --------------------- two-pass fallback (x too big) ---------------------
    else:
        def p1_bytes(bt, tn):      # streamed x + resident attn output (2 bufs)
            return 2 * bt * cs * tn * 4 + 2 * bt * cs * cl * 4

        def p2_bytes(bt, tn):      # streamed x + out + attn input
            return 4 * bt * cs * tn * 4 + 2 * bt * cs * cl * 4

        def pick(cost_fn):
            for tn in tn_cands:
                for bt in bt_cands:
                    if cost_fn(bt, tn) <= budget - margin:
                        return bt, tn
            return 1, tn_cands[-1]

        bt1, tn1 = pick(p1_bytes)
        bt2, tn2 = pick(p2_bytes)
        nb1, nn1 = B // bt1, n_pad // tn1
        nb2, nn2 = B // bt2, n_pad // tn2
        vmem1 = int(max(32 << 20, min(budget, p1_bytes(bt1, tn1) + margin)))
        vmem2 = int(max(32 << 20, min(budget, p2_bytes(bt2, tn2) + margin)))

        attn = pl.pallas_call(
            _make_energy_kernel(use_f32),
            out_shape=jax.ShapeDtypeStruct((B, C, C), jnp.float32),
            grid_spec=pltpu.PrefetchScalarGridSpec(
                num_scalar_prefetch=0,
                grid=(nb1, nn1),
                in_specs=[
                    pl.BlockSpec(memory_space=pltpu.SMEM),
                    pl.BlockSpec((bt1, C, tn1), lambda b, n: (b, 0, n)),
                ],
                out_specs=pl.BlockSpec((bt1, C, C), lambda b, n: (b, 0, 0)),
            ),
            compiler_params=pltpu.CompilerParams(
                dimension_semantics=("parallel", "arbitrary"),
                vmem_limit_bytes=vmem1,
            ),
        )(gamma, x_flat)

        out_flat = pl.pallas_call(
            _make_apply_kernel(use_f32),
            out_shape=jax.ShapeDtypeStruct((B, C, n_pad), jnp.float32),
            grid_spec=pltpu.PrefetchScalarGridSpec(
                num_scalar_prefetch=0,
                grid=(nb2, nn2),
                in_specs=[
                    pl.BlockSpec((bt2, C, C), lambda b, n: (b, 0, 0)),
                    pl.BlockSpec((bt2, C, tn2), lambda b, n: (b, 0, n)),
                ],
                out_specs=pl.BlockSpec((bt2, C, tn2), lambda b, n: (b, 0, n)),
            ),
            compiler_params=pltpu.CompilerParams(
                dimension_semantics=("parallel", "parallel"),
                vmem_limit_bytes=vmem2,
            ),
        )(attn, x_flat)

    out = out_flat[:, :, :N].reshape(B, C, H, W)
    return out.astype(x.dtype)


def channel_attention_ref(x, gamma):
    """Pure-JAX reference mirroring the PyTorch forward (highest precision)."""
    B, C, H, W = x.shape
    q = x.reshape(B, C, -1)                                   # (B, C, N)
    energy = jnp.einsum("bcn,bdn->bcd", q, q,
                        precision=jax.lax.Precision.HIGHEST)  # (B, C, C)
    energy_new = jnp.max(energy, axis=-1, keepdims=True) - energy
    attn = jax.nn.softmax(energy_new, axis=-1)
    out = jnp.einsum("bcd,bdn->bcn", attn, q,
                     precision=jax.lax.Precision.HIGHEST).reshape(B, C, H, W)
    return gamma[0] * out + x


if __name__ == "__main__":
    key = jax.random.PRNGKey(0)

    # nn.Parameter(torch.zeros(1)) -> shape (1,); use a deterministic nonzero
    # value so the attention path is exercised numerically.
    gamma = jnp.array([0.5], dtype=jnp.float32)

    # Case 1: lane-aligned spatial size (exercises the fused single-pass path).
    B, C, H, W = 2, 4, 16, 16
    x = jax.random.normal(key, (B, C, H, W), dtype=jnp.float32)
    out = jax.block_until_ready(channel_attention(x, gamma))
    ref = channel_attention_ref(x, gamma)
    assert out.shape == (B, C, H, W)
    assert jnp.allclose(out, ref, atol=3e-2, rtol=3e-2), "mismatch vs reference (aligned)"

    # Case 2: non-128-aligned spatial size (exercises the zero-padding path).
    B2, C2, H2, W2 = 2, 4, 7, 7
    x2 = jax.random.normal(jax.random.PRNGKey(1), (B2, C2, H2, W2), dtype=jnp.float32)
    out2 = jax.block_until_ready(channel_attention(x2, gamma))
    ref2 = channel_attention_ref(x2, gamma)
    assert out2.shape == (B2, C2, H2, W2)
    assert jnp.allclose(out2, ref2, atol=3e-2, rtol=3e-2), "mismatch vs reference (padded)"

    print("KERNEL_OK")
</pallas_src>

<mosaic_0001>
module attributes {stable_mosaic.version = 11 : i64} {
  func.func @kernel(%arg0: i32, %arg1: i32, %arg2: memref<1xf32, #tpu.memory_space<smem>>, %arg3: memref<2x4x256xf32, #tpu.memory_space<vmem>>, %arg4: memref<2x4x256xf32, #tpu.memory_space<vmem>>, %arg5: memref<2x4x4xf32, #tpu.memory_space<vmem>>, %arg6: memref<1x2x4x256xf32, #tpu.memory_space<vmem>>) attributes {dimension_semantics = [#tpu.dimension_semantics<parallel>, #tpu.dimension_semantics<arbitrary>], iteration_bounds = array<i64: 1, 2>, scalar_prefetch = 0 : i64, scratch_operands = 2 : i64, tpu.core_type = #tpu.core_type<tc>, window_params = [{transform_indices = @transform_0, window_bounds = array<i64: 1>}, {transform_indices = @transform_1, window_bounds = array<i64: 2, 4, 256>}, {transform_indices = @transform_2, window_bounds = array<i64: 2, 4, 256>}]} {
    %c0_i32 = arith.constant 0 : i32
    %0 = arith.cmpi eq, %arg1, %c0_i32 : i32
    %1 = arith.extui %0 : i1 to i32
    %c0_i32_0 = arith.constant 0 : i32
    %2 = arith.cmpi ne, %1, %c0_i32_0 : i32
    scf.if %2 {
      %cst = arith.constant 0.000000e+00 : f32
      %12 = vector.broadcast %cst : f32 to vector<2x4x4xf32>
      %c0 = arith.constant 0 : index
      %c0_6 = arith.constant 0 : index
      %c0_7 = arith.constant 0 : index
      %13 = vector.load %arg5[%c0, %c0_6, %c0_7] : memref<2x4x4xf32, #tpu.memory_space<vmem>>, vector<2x4x4xf32>
      tpu.vector_store %arg5[%c0, %c0_6, %c0_7], %12 {strides = array<i32>} : memref<2x4x4xf32, #tpu.memory_space<vmem>>, vector<2x4x4xf32>,
    } else {
    }
    %c1_i32 = arith.constant 1 : i32
    %3 = arith.cmpi slt, %arg1, %c1_i32 : i32
    %4 = arith.extui %3 : i1 to i32
    %c0_i32_1 = arith.constant 0 : i32
    %5 = arith.cmpi ne, %4, %c0_i32_1 : i32
    scf.if %5 {
      %c0 = arith.constant 0 : index
      %c0_6 = arith.constant 0 : index
      %c0_7 = arith.constant 0 : index
      %12 = vector.load %arg3[%c0, %c0_6, %c0_7] : memref<2x4x256xf32, #tpu.memory_space<vmem>>, vector<2x4x256xf32>
      %13 = arith.index_cast %arg1 : i32 to index
      %c0_8 = arith.constant 0 : index
      %c0_9 = arith.constant 0 : index
      %c0_10 = arith.constant 0 : index
      %14 = vector.load %arg6[%13, %c0_8, %c0_9, %c0_10] : memref<1x2x4x256xf32, #tpu.memory_space<vmem>>, vector<1x2x4x256xf32>
      %15 = vector.shape_cast %14 : vector<1x2x4x256xf32> to vector<2x4x256xf32>
      %16 = vector.shape_cast %12 : vector<2x4x256xf32> to vector<1x2x4x256xf32>
      tpu.vector_store %arg6[%13, %c0_8, %c0_9, %c0_10], %16 {strides = array<i32>} : memref<1x2x4x256xf32, #tpu.memory_space<vmem>>, vector<1x2x4x256xf32>,
      %c0_11 = arith.constant 0 : index
      %c0_12 = arith.constant 0 : index
      %c0_13 = arith.constant 0 : index
      %17 = vector.load %arg5[%c0_11, %c0_12, %c0_13] : memref<2x4x4xf32, #tpu.memory_space<vmem>>, vector<2x4x4xf32>
      %cst = arith.constant dense<0.000000e+00> : vector<2x4x4xf32>
      %18 = tpu.matmul %12, %12, %cst {dimension_numbers = #tpu.dot_dimension_numbers<[2], [2], [1], [1], [0, 0, 0, 1, 1, 1], [0], [0]>} : vector<2x4x256xf32>, vector<2x4x256xf32>, vector<2x4x4xf32> -> vector<2x4x4xf32>
      %19 = arith.addf %17, %18 : vector<2x4x4xf32>
      %c0_14 = arith.constant 0 : index
      %c0_15 = arith.constant 0 : index
      %c0_16 = arith.constant 0 : index
      %20 = vector.load %arg5[%c0_14, %c0_15, %c0_16] : memref<2x4x4xf32, #tpu.memory_space<vmem>>, vector<2x4x4xf32>
      tpu.vector_store %arg5[%c0_14, %c0_15, %c0_16], %19 {strides = array<i32>} : memref<2x4x4xf32, #tpu.memory_space<vmem>>, vector<2x4x4xf32>,
    } else {
    }
    %c0_i32_2 = arith.constant 0 : i32
    %6 = arith.cmpi eq, %arg1, %c0_i32_2 : i32
    %7 = arith.extui %6 : i1 to i32
    %c0_i32_3 = arith.constant 0 : i32
    %8 = arith.cmpi ne, %7, %c0_i32_3 : i32
    scf.if %8 {
      %c0 = arith.constant 0 : index
      %c0_6 = arith.constant 0 : index
      %c0_7 = arith.constant 0 : index
      %12 = vector.load %arg5[%c0, %c0_6, %c0_7] : memref<2x4x4xf32, #tpu.memory_space<vmem>>, vector<2x4x4xf32>
      %cst = arith.constant dense<0x7F800000> : vector<2x4xf32>
      %13 = vector.multi_reduction <minimumf>, %12, %cst [2] : vector<2x4x4xf32> to vector<2x4xf32>
      %14 = vector.shape_cast %13 : vector<2x4xf32> to vector<2x4x1xf32>
      %15 = vector.broadcast %14 : vector<2x4x1xf32> to vector<2x4x4xf32>
      %16 = arith.subf %15, %12 : vector<2x4x4xf32>
      %17 = math.exp %16 : vector<2x4x4xf32>
      %cst_8 = arith.constant dense<0.000000e+00> : vector<2x4xf32>
      %18 = vector.multi_reduction <add>, %17, %cst_8 [2] : vector<2x4x4xf32> to vector<2x4xf32>
      %19 = vector.shape_cast %18 : vector<2x4xf32> to vector<2x4x1xf32>
      %c0_9 = arith.constant 0 : index
      %20 = memref.load %arg2[%c0_9] : memref<1xf32, #tpu.memory_space<smem>>
      %21 = vector.broadcast %20 : f32 to vector<2x4x1xf32>
      %22 = arith.divf %21, %19 : vector<2x4x1xf32>
      %23 = vector.broadcast %22 : vector<2x4x1xf32> to vector<2x4x4xf32>
      %24 = arith.mulf %17, %23 : vector<2x4x4xf32>
      %c0_10 = arith.constant 0 : index
      %c0_11 = arith.constant 0 : index
      %c0_12 = arith.constant 0 : index
      %25 = vector.load %arg5[%c0_10, %c0_11, %c0_12] : memref<2x4x4xf32, #tpu.memory_space<vmem>>, vector<2x4x4xf32>
      tpu.vector_store %arg5[%c0_10, %c0_11, %c0_12], %24 {strides = array<i32>} : memref<2x4x4xf32, #tpu.memory_space<vmem>>, vector<2x4x4xf32>,
    } else {
    }
    %c1_i32_4 = arith.constant 1 : i32
    %9 = arith.cmpi sge, %arg1, %c1_i32_4 : i32
    %10 = arith.extui %9 : i1 to i32
    %c0_i32_5 = arith.constant 0 : i32
    %11 = arith.cmpi ne, %10, %c0_i32_5 : i32
    scf.if %11 {
      %c1_i32_6 = arith.constant 1 : i32
      %12 = arith.subi %arg1, %c1_i32_6 : i32
      %13 = arith.index_cast %12 : i32 to index
      %c0 = arith.constant 0 : index
      %c0_7 = arith.constant 0 : index
      %c0_8 = arith.constant 0 : index
      %14 = vector.load %arg6[%13, %c0, %c0_7, %c0_8] : memref<1x2x4x256xf32, #tpu.memory_space<vmem>>, vector<1x2x4x256xf32>
      %15 = vector.shape_cast %14 : vector<1x2x4x256xf32> to vector<2x4x256xf32>
      %c0_9 = arith.constant 0 : index
      %c0_10 = arith.constant 0 : index
      %c0_11 = arith.constant 0 : index
      %16 = vector.load %arg5[%c0_9, %c0_10, %c0_11] : memref<2x4x4xf32, #tpu.memory_space<vmem>>, vector<2x4x4xf32>
      %cst = arith.constant dense<0.000000e+00> : vector<2x4x256xf32>
      %17 = tpu.matmul %16, %15, %cst {dimension_numbers = #tpu.dot_dimension_numbers<[2], [1], [1], [2], [0, 0, 0, 1, 1, 2], [0], [0]>} : vector<2x4x4xf32>, vector<2x4x256xf32>, vector<2x4x256xf32> -> vector<2x4x256xf32>
      %18 = arith.addf %17, %15 : vector<2x4x256xf32>
      %c0_12 = arith.constant 0 : index
      %c0_13 = arith.constant 0 : index
      %c0_14 = arith.constant 0 : index
      %19 = vector.load %arg4[%c0_12, %c0_13, %c0_14] : memref<2x4x256xf32, #tpu.memory_space<vmem>>, vector<2x4x256xf32>
      tpu.vector_store %arg4[%c0_12, %c0_13, %c0_14], %18 {strides = array<i32>} : memref<2x4x256xf32, #tpu.memory_space<vmem>>, vector<2x4x256xf32>,
    } else {
    }
    return
  }
  func.func @transform_0(%arg0: i32, %arg1: i32) -> i32 {
    %c0_i32 = arith.constant 0 : i32
    %c0_i32_0 = arith.constant 0 : i32
    return %c0_i32 : i32
  }
  func.func @transform_1(%arg0: i32, %arg1: i32) -> (i32, i32, i32) {
    %c0_i32 = arith.constant 0 : i32
    %0 = arith.minsi %arg1, %c0_i32 : i32
    %c0_i32_0 = arith.constant 0 : i32
    %c0_i32_1 = arith.constant 0 : i32
    return %arg0, %c0_i32_0, %0 : i32, i32, i32
  }
  func.func @transform_2(%arg0: i32, %arg1: i32) -> (i32, i32, i32) {
    %c1_i32 = arith.constant 1 : i32
    %0 = arith.subi %arg1, %c1_i32 : i32
    %c0_i32 = arith.constant 0 : i32
    %1 = arith.maxsi %0, %c0_i32 : i32
    %c0_i32_0 = arith.constant 0 : i32
    %c0_i32_1 = arith.constant 0 : i32
    return %arg0, %c0_i32_0, %1 : i32, i32, i32
  }
}

</mosaic_0001>

<llo_original>
// kernel: tpu_custom_call.1
$region0: #{tpu_custom_call.1}
  #allocation0 [shape = 'u32[]', space=smem, size = 0x4, offset = 0x4, fixed_abs, tag = 'smem constant byte address 0x4 - core index']
  #allocation1 [shape = 'u32[72,128]{1,0:T(1,128)}', space=vmem, size = 0x9000, scoped, tag = 'internal scratch']
  #allocation2 [shape = 'f32[2,4,4]{2,1,0:T(4,128)}', space=vmem, size = 0x1000, scoped, tag = 'scratch operand']
  #allocation3 [shape = 'f32[1,2,4,256]{3,2,1,0:T(4,128)}', space=vmem, size = 0x2000, scoped, tag = 'scratch operand']
  #allocation4 [shape = 'f32[1]{0:T(128)S(6)}', space=smem, size = 0x200, scoped, tag = 'scoped memory for tpu_custom_call.1']
  %s0 = inlined_call_operand.<no memory space> [shape: f32[1], index: 0, kind: input, shape index: {}]
  %s1 = inlined_call_operand.hbm [shape: f32[2,4,256], index: 1, kind: input, shape index: {}]
  %s2 = inlined_call_operand.hbm [shape: f32[2,4,256], index: 2, kind: output, shape index: {}]
  %s3 = sld [smem:[#allocation0]]
  $region61: #{tpu_custom_call.1} parent=0
    _
  %s5 = ssub.s32 1, %s3
  %s6 = scalar_select 0, %s5, %s3
  %7 = sst [smem:[#allocation4]] %s0
  $region1: #{tpu_custom_call.1} parent=0
    #allocation5 [shape = 'u8[16384]{0}', space=vmem, size = 0x4000, scoped, tag = 'input window, operand 1']
    #allocation6 [shape = 's32[2]{0}', space=sflag, size = 0x8, scoped, tag = 'scoped memory for tpu_custom_call.1']
    #allocation7 [shape = 's32[2]{0}', space=sflag, size = 0x8, scoped, tag = 'scoped memory for tpu_custom_call.1']
    #allocation8 [shape = 'u8[16384]{0}', space=vmem, size = 0x4000, scoped, tag = 'output window, operand 0']
    %8 = vsyncpa [#allocation6], 0
    %s9 = scalar_lea.sflag [#allocation6], 1
    %10 = vsyncpa %s9, 0
    %11 = vsyncpa [#allocation7], 0
    %s12 = scalar_lea.sflag [#allocation7], 1
    %13 = vsyncpa %s12, 0
    loop: start=0, step=1, limit=4
    $region2: #{tpu_custom_call.1} parent=1 // loop_pre_header
      _
    $region3: #{tpu_custom_call.1} parent=1 // loop_header
      %s15 = sphi 0, %s19
      %p16 = scmp.ge.s32.totalorder %s15, 4
      %s22 = sphi 0, %s34
      %s23 = sphi 0, %s30
      %s24 = sphi 0, %s22
      %s25 = sphi 0, %s23
      %s26 = sphi 0, %s24
      %s27 = sphi 0, %s25
      %s35 = sphi 0, %s35
      %s37 = sphi 0, %s35
      %s38 = sphi 0, %s37
      %s52 = sphi 0, %s38
      %s64 = sphi 0, %s66
      %s67 = sphi 0, %s64
      %s68 = sphi 0, %s67
      %s84 = sphi 0, %s68
      %s98 = sphi 0, %s100
      %s101 = sphi 0, %s98
      %s102 = sphi 0, %s101
      %s118 = sphi 0, %s102
    $region4: #{tpu_custom_call.1} parent=1 // loop_header_branch
      %18 = sbr.rel (%p16) target = $region8
    $region5: #{tpu_custom_call.1} parent=1 // loop_body
      %s20 = ssub.s32 %s15, 1
      %s21 = ssub.s32 %s15, 2
      %s28 = sadd.s32 1, %s23
      %p29 = scmp.ge.s32.totalorder %s28, 2
      %s30 = scalar_select %p29, 0, %s28
      %s31 = sadd.s32 1, %s22
      %s32 = scalar_select %p29, %s31, %s22
      %p33 = scmp.ge.s32.totalorder %s32, 1
      %s34 = scalar_select %p33, 0, %s32
      %s36 = sadd.s32 %s35, 1
      %p39 = scmp.eq.s32.totalorder %s15, 1
      %p40 = scmp.ne.s32.totalorder %s35, %s37
      %p41 = scmp.eq.s32.totalorder %s15, 0
      %p42 = por %p40, %p41
      %p43 = scmp.ne.s32.totalorder %s35, %s37
      %p44 = scmp.eq.s32.totalorder %s20, 1
      %p45 = por %p43, %p44
      %p46 = scmp.ne.s32.totalorder %s37, %s38
      %p47 = scmp.eq.s32.totalorder %s20, 0
      %p48 = por %p46, %p47
      %p49 = scmp.ne.s32.totalorder %s37, %s38
      %p50 = scmp.eq.s32.totalorder %s21, 1
      %p51 = por %p49, %p50
      %p53 = scmp.ne.s32.totalorder %s38, %s52
      %p54 = scmp.eq.s32.totalorder %s21, 0
      %p55 = por %p53, %p54
      %p56 = scmp.lt.s32.totalorder %s23, 0
      %s57 = scalar_select %p56, %s23, 0
      %p58 = scmp.lt.s32.totalorder %s30, 0
      %s59 = scalar_select %p58, %s30, 0
      %s60 = ssub.s32 %s22, %s34
      %s61 = ssub.s32 %s57, %s59
      %s62 = sor.u32 %s60, %s61
      %p63 = scmp.eq.s32.totalorder %s62, 0
      %s65 = sadd.s32 %s64, 1
      %s66 = scalar_select %p63, %s64, %s65
      %p69 = pneg %p63
      %p70 = scmp.eq.s32.totalorder %s15, 1
      %p71 = por %p69, %p70
      %p72 = scmp.ne.s32.totalorder %s64, %s67
      %p73 = scmp.eq.s32.totalorder %s15, 0
      %p74 = por %p72, %p73
      %p75 = scmp.ne.s32.totalorder %s64, %s67
      %p76 = scmp.eq.s32.totalorder %s20, 1
      %p77 = por %p75, %p76
      %p78 = scmp.ne.s32.totalorder %s67, %s68
      %p79 = scmp.eq.s32.totalorder %s20, 0
      %p80 = por %p78, %p79
      %p81 = scmp.ne.s32.totalorder %s67, %s68
      %p82 = scmp.eq.s32.totalorder %s21, 1
      %p83 = por %p81, %p82
      %p85 = scmp.ne.s32.totalorder %s68, %s84
      %p86 = scmp.eq.s32.totalorder %s21, 0
      %p87 = por %p85, %p86
      %s88 = ssub.s32 %s23, 1
      %p89 = scmp.gt.s32.totalorder %s88, 0
      %s90 = scalar_select %p89, %s88, 0
      %s91 = ssub.s32 %s30, 1
      %p92 = scmp.gt.s32.totalorder %s91, 0
      %s93 = scalar_select %p92, %s91, 0
      %s94 = ssub.s32 %s22, %s34
      %s95 = ssub.s32 %s90, %s93
      %s96 = sor.u32 %s94, %s95
      %p97 = scmp.eq.s32.totalorder %s96, 0
      %s99 = sadd.s32 %s98, 1
      %s100 = scalar_select %p97, %s98, %s99
      %p103 = pneg %p97
      %p104 = scmp.eq.s32.totalorder %s15, 1
      %p105 = por %p103, %p104
      %p106 = scmp.ne.s32.totalorder %s98, %s101
      %p107 = scmp.eq.s32.totalorder %s15, 0
      %p108 = por %p106, %p107
      %p109 = scmp.ne.s32.totalorder %s98, %s101
      %p110 = scmp.eq.s32.totalorder %s20, 1
      %p111 = por %p109, %p110
      %p112 = scmp.ne.s32.totalorder %s101, %s102
      %p113 = scmp.eq.s32.totalorder %s20, 0
      %p114 = por %p112, %p113
      %p115 = scmp.ne.s32.totalorder %s101, %s102
      %p116 = scmp.eq.s32.totalorder %s21, 1
      %p117 = por %p115, %p116
      %p119 = scmp.ne.s32.totalorder %s102, %s118
      %p120 = scmp.eq.s32.totalorder %s21, 0
      %p121 = por %p119, %p120
      %p122 = scmp.le.s32.totalorder 1, %s15
      %p123 = scmp.lt.s32.totalorder %s15, 3
      %p124 = pnand %p122, %p123
      %p125 = pneg %p124
      // Predicated region
      $region9: #{tpu_custom_call.1} parent=5 // pred_check
        _
      $region10: #{tpu_custom_call.1} parent=5 // pred_check_branch
        %127 = sbr.rel (%p124) target = $region12
      $region11: #{tpu_custom_call.1} parent=5 // pred_region
        %s128 = ssub.s32 %s15, 1
        // Predicated region
        $region13: #{tpu_custom_call.1} parent=11 // pred_check
          %p129 = pneg %p48
        $region14: #{tpu_custom_call.1} parent=11 // pred_check_branch
          %131 = sbr.rel (%p129) target = $region16
        $region15: #{tpu_custom_call.1} parent=11 // pred_region
          _
        $region16: #{tpu_custom_call.1} parent=11 // pred_fallthru
          _
      $region12: #{tpu_custom_call.1} parent=5 // pred_fallthru
        _
      %p132 = scmp.lt.s32.totalorder %s15, 2
      // Predicated region
      $region17: #{tpu_custom_call.1} parent=5 // pred_check
        %p133 = pneg %p132
      $region18: #{tpu_custom_call.1} parent=5 // pred_check_branch
        %135 = sbr.rel (%p133) target = $region20
      $region19: #{tpu_custom_call.1} parent=5 // pred_region
        // Predicated region
        $region21: #{tpu_custom_call.1} parent=19 // pred_check
          %p136 = pneg %p74
        $region22: #{tpu_custom_call.1} parent=19 // pred_check_branch
          %138 = sbr.rel (%p136) target = $region24
        $region23: #{tpu_custom_call.1} parent=19 // pred_region
          %s139 = sand.u32 %s64, 1
          %s140 = scalar_lea.sflag [#allocation6], %s139
          %s141 = sand.u32 %s64, 1
          %s142 = smul.addr %s141, 16
          %s143 = scalar_lea.vmem [#allocation5], %s142
          %p144 = scmp.lt.s32.totalorder %s23, 0
          %s145 = scalar_select %p144, %s23, 0
          %s146 = smul.u32 2, %s22
          %s147 = smul.u32 2, %s145
          %149 = vsyncadd %s140, 0
          %s150 = smul.addr %s146, 2
          %s151 = sadd.s32 %s147, %s150
          %s152 = smul.addr %s151, 4
          %s153 = scalar_lea.hbm %s1, %s152
          %s154 = sshll.u32 %s153, 4
          %s155 = int_to_ptr.hbm [resolvable:$true] %s154
          %s156 = sshll.u32 %s143, 4
          %s157 = int_to_ptr.vmem [resolvable:$true] %s156
          %162 = dma.hbm_to_vmem [thread:$0]  %s155, 256, %s157, %s140, 128, 128, 8
        $region24: #{tpu_custom_call.1} parent=19 // pred_fallthru
          _
      $region20: #{tpu_custom_call.1} parent=5 // pred_fallthru
        _
      %p163 = scmp.le.s32.totalorder 1, %s15
      %p164 = scmp.lt.s32.totalorder %s15, 3
      %p165 = pnand %p163, %p164
      %p166 = pneg %p165
      // Predicated region
      $region25: #{tpu_custom_call.1} parent=5 // pred_check
        _
      $region26: #{tpu_custom_call.1} parent=5 // pred_check_branch
        %168 = sbr.rel (%p165) target = $region28
      $region27: #{tpu_custom_call.1} parent=5 // pred_region
        %s169 = ssub.s32 %s15, 1
        %s170 = sand.u32 %s67, 1
        %s171 = scalar_lea.sflag [#allocation6], %s170
        %s172 = sand.u32 %s67, 1
        %s173 = smul.addr %s172, 16
        %s174 = scalar_lea.vmem [#allocation5], %s173
        // Predicated region
        $region29: #{tpu_custom_call.1} parent=27 // pred_check
          %p175 = pneg %p80
        $region30: #{tpu_custom_call.1} parent=27 // pred_check_branch
          %177 = sbr.rel (%p175) target = $region32
        $region31: #{tpu_custom_call.1} parent=27 // pred_region
          %179 = dma.done %s171, 256
        $region32: #{tpu_custom_call.1} parent=27 // pred_fallthru
          _
        %p180 = pneg %p48
        %p181 = pneg %p45
        %s182 = sand.u32 %s67, 1
        %s183 = scalar_lea.sflag [#allocation6], %s182
        %s184 = sand.u32 %s67, 1
        %s185 = smul.addr %s184, 16
        %s186 = scalar_lea.vmem [#allocation5], %s185
        %p187 = pneg %p80
        %p188 = pneg %p77
        %p189 = pneg %p114
        %p190 = pneg %p111
        %s191 = sand.u32 %s101, 1
        %s192 = scalar_lea.sflag [#allocation7], %s191
        %s193 = sand.u32 %s101, 1
        %s194 = smul.addr %s193, 16
        %s195 = scalar_lea.vmem [#allocation8], %s194
        %p196 = scmp.lt.s32.totalorder %s25, 0
        %s197 = scalar_select %p196, %s25, 0
        %s198 = smul.u32 2, %s24
        %s199 = smul.u32 2, %s197
        %s200 = ssub.s32 %s25, 1
        %p201 = scmp.gt.s32.totalorder %s200, 0
        %s202 = scalar_select %p201, %s200, 0
        %s203 = smul.u32 2, %s24
        %s204 = smul.u32 2, %s202
        %p205 = scmp.eq.s32.totalorder %s25, 0
        // Predicated region
        $region33: #{tpu_custom_call.1} parent=27 // pred_check
          %p206 = pneg %p205
        $region34: #{tpu_custom_call.1} parent=27 // pred_check_branch
          %208 = sbr.rel (%p206) target = $region36
        $region35: #{tpu_custom_call.1} parent=27 // pred_region
          %vm209 = vcmask 27648
          %210 = vst.msk [vmem:[#allocation2] sm:$0xf] %vm209, 0.0
          %211 = vst.msk [vmem:[#allocation2 + $0x4] sm:$0xf] %vm209, 0.0
        $region36: #{tpu_custom_call.1} parent=27 // pred_fallthru
          _
        %p212 = scmp.lt.s32.totalorder %s25, 1
        // Predicated region
        $region37: #{tpu_custom_call.1} parent=27 // pred_check
          %p213 = pneg %p212
        $region38: #{tpu_custom_call.1} parent=27 // pred_check_branch
          %215 = sbr.rel (%p213) target = $region40
        $region39: #{tpu_custom_call.1} parent=27 // pred_region
          %v216 = vld [vmem:[%s174] sm:$0xff]
          %v217 = vld [vmem:[%s174 + $0x8] sm:$0xff]
          %s218 = smul.u32 %s25, 4
          %s219 = smul.addr %s218, 4
          %s220 = scalar_lea.vmem [#allocation3], %s219
          %221 = vst [vmem:[%s220] sm:$0xff] %v216
          %222 = vst [vmem:[%s220 + $0x8] sm:$0xff] %v217
          %v223 = vld [vmem:[#allocation2] sm:$0xf]
          %v224 = vld [vmem:[#allocation2 + $0x4] sm:$0xf]
          %226 = vst [vmem:[#allocation1] ss:$2 sm:$0xff] %v216
          %v227 = vld.sshfl [vmem:[#allocation1] sm:$0xff pattern:$0x75316420]
          %v228 = vld.sshfl [vmem:[#allocation1 + $0x8] sm:$0xff pattern:$0x75316420]
          %231 = vst [vmem:[#allocation1] ss:$2 sm:$0xff] %v216
          %v232 = vld.sshfl [vmem:[#allocation1] sm:$0xff pattern:$0x75316420]
          %v233 = vld.sshfl [vmem:[#allocation1 + $0x8] sm:$0xff pattern:$0x75316420]
          %236 = vmatpush.xpose.msra.mxu0 0.0
          %237 = vmatpush.xpose.msra.mxu0 0.0
          %238 = vmatpush.xpose.msra.mxu0 0.0
          %239 = vmatpush.xpose.msra.mxu0 0.0
          %240 = vmatpush.xpose.msra.mxu0 0.0
          %241 = vmatpush.xpose.msra.mxu0 0.0
          %242 = vmatpush.xpose.msra.mxu0 0.0
          %243 = vmatpush.xpose.msra.mxu0 0.0
          %244 = vmatpush.xpose.msra.mxu0 0.0
          %245 = vmatpush.xpose.msra.mxu0 0.0
          %246 = vmatpush.xpose.msra.mxu0 0.0
          %247 = vmatpush.xpose.msra.mxu0 0.0
          %248 = vmatpush.xpose.msra.mxu0 0.0
          %249 = vmatpush.xpose.msra.mxu0 0.0
          %250 = vmatpush.xpose.msra.mxu0 0.0
          %251 = vmatpush.xpose.msra.mxu0 %v232
          %252 = vmatmul.f32.gmra.mxu0 %v227
          %v253 = vpop.f32.mrf.mxu0
          %v254 = vadd.f32 0.0, %v253
          %255 = vdwg.mxu0
          %256 = vmatpush.xpose.msra.mxu0 0.0
          %257 = vmatpush.xpose.msra.mxu0 0.0
          %258 = vmatpush.xpose.msra.mxu0 0.0
          %259 = vmatpush.xpose.msra.mxu0 0.0
          %260 = vmatpush.xpose.msra.mxu0 0.0
          %261 = vmatpush.xpose.msra.mxu0 0.0
          %262 = vmatpush.xpose.msra.mxu0 0.0
          %263 = vmatpush.xpose.msra.mxu0 0.0
          %264 = vmatpush.xpose.msra.mxu0 0.0
          %265 = vmatpush.xpose.msra.mxu0 0.0
          %266 = vmatpush.xpose.msra.mxu0 0.0
          %267 = vmatpush.xpose.msra.mxu0 0.0
          %268 = vmatpush.xpose.msra.mxu0 0.0
          %269 = vmatpush.xpose.msra.mxu0 0.0
          %270 = vmatpush.xpose.msra.mxu0 0.0
          %271 = vmatpush.xpose.msra.mxu0 %v233
          %272 = vmatmul.f32.gmra.mxu0 %v228
          %v273 = vpop.f32.mrf.mxu0
          %v274 = vadd.f32 %v254, %v273
          %275 = vdwg.mxu0
          %277 = vst [vmem:[#allocation1] ss:$2 sm:$0xff] %v217
          %v278 = vld.sshfl [vmem:[#allocation1] sm:$0xff pattern:$0x75316420]
          %v279 = vld.sshfl [vmem:[#allocation1 + $0x8] sm:$0xff pattern:$0x75316420]
          %282 = vst [vmem:[#allocation1] ss:$2 sm:$0xff] %v217
          %v283 = vld.sshfl [vmem:[#allocation1] sm:$0xff pattern:$0x75316420]
          %v284 = vld.sshfl [vmem:[#allocation1 + $0x8] sm:$0xff pattern:$0x75316420]
          %287 = vmatpush.xpose.msra.mxu0 0.0
          %288 = vmatpush.xpose.msra.mxu0 0.0
          %289 = vmatpush.xpose.msra.mxu0 0.0
          %290 = vmatpush.xpose.msra.mxu0 0.0
          %291 = vmatpush.xpose.msra.mxu0 0.0
          %292 = vmatpush.xpose.msra.mxu0 0.0
          %293 = vmatpush.xpose.msra.mxu0 0.0
          %294 = vmatpush.xpose.msra.mxu0 0.0
          %295 = vmatpush.xpose.msra.mxu0 0.0
          %296 = vmatpush.xpose.msra.mxu0 0.0
          %297 = vmatpush.xpose.msra.mxu0 0.0
          %298 = vmatpush.xpose.msra.mxu0 0.0
          %299 = vmatpush.xpose.msra.mxu0 0.0
          %300 = vmatpush.xpose.msra.mxu0 0.0
          %301 = vmatpush.xpose.msra.mxu0 0.0
          %302 = vmatpush.xpose.msra.mxu0 %v283
          %303 = vmatmul.f32.gmra.mxu0 %v278
          %v304 = vpop.f32.mrf.mxu0
          %v305 = vadd.f32 0.0, %v304
          %306 = vdwg.mxu0
          %307 = vmatpush.xpose.msra.mxu0 0.0
          %308 = vmatpush.xpose.msra.mxu0 0.0
          %309 = vmatpush.xpose.msra.mxu0 0.0
          %310 = vmatpush.xpose.msra.mxu0 0.0
          %311 = vmatpush.xpose.msra.mxu0 0.0
          %312 = vmatpush.xpose.msra.mxu0 0.0
          %313 = vmatpush.xpose.msra.mxu0 0.0
          %314 = vmatpush.xpose.msra.mxu0 0.0
          %315 = vmatpush.xpose.msra.mxu0 0.0
          %316 = vmatpush.xpose.msra.mxu0 0.0
          %317 = vmatpush.xpose.msra.mxu0 0.0
          %318 = vmatpush.xpose.msra.mxu0 0.0
          %319 = vmatpush.xpose.msra.mxu0 0.0
          %320 = vmatpush.xpose.msra.mxu0 0.0
          %321 = vmatpush.xpose.msra.mxu0 0.0
          %322 = vmatpush.xpose.msra.mxu0 %v284
          %323 = vmatmul.f32.gmra.mxu0 %v279
          %v324 = vpop.f32.mrf.mxu0
          %v325 = vadd.f32 %v305, %v324
          %326 = vdwg.mxu0
          %v327 = vadd.f32 %v223, %v274
          %v328 = vadd.f32 %v224, %v325
          %vm329 = vcmask 27648
          %330 = vst.msk [vmem:[#allocation2] sm:$0xf] %vm329, %v327
          %331 = vst.msk [vmem:[#allocation2 + $0x4] sm:$0xf] %vm329, %v328
        $region40: #{tpu_custom_call.1} parent=27 // pred_fallthru
          _
        // Predicated region
        $region41: #{tpu_custom_call.1} parent=27 // pred_check
          %p332 = pneg %p205
        $region42: #{tpu_custom_call.1} parent=27 // pred_check_branch
          %334 = sbr.rel (%p332) target = $region44
        $region43: #{tpu_custom_call.1} parent=27 // pred_region
          %v335 = vld [vmem:[#allocation2] sm:$0xf]
          %v336 = vld [vmem:[#allocation2 + $0x4] sm:$0xf]
          %vm337 = vcmask 27648
          %v338 = vsel %vm337, %v335, inf
          %339 = vmin.xlane.f32.xlu0 %v338
          %v340 = vpop.xlane.xlu0 %339
          %v341 = vsel %vm337, %v336, inf
          %342 = vmin.xlane.f32.xlu0 %v341
          %v343 = vpop.xlane.xlu0 %342
          %v344 = vsub.f32 %v340, %v335
          %v345 = vsub.f32 %v343, %v336
          %v346 = vmul.f32 %v344, 1.442695
          %v347 = vpow.pop %v346
          %v348 = vmul.f32 %v345, 1.442695
          %v349 = vpow.pop %v348
          %v350 = vsel %vm337, %v347, 0.0
          %351 = vadd.xlane.f32.xlu0 %v350
          %v352 = vpop.xlane.xlu0 %351
          %v353 = vsel %vm337, %v349, 0.0
          %354 = vadd.xlane.f32.xlu0 %v353
          %v355 = vpop.xlane.xlu0 %354
          %s356 = sld [smem:[#allocation4]]
          %v357 = vstv %s356
          %v358 = vrcp.pop %v352
          %v359 = vmul.f32 %v352, %v358
          %v360 = vsub.f32 1.0, %v359
          %v361 = vmul.f32 %v358, %v360
          %v362 = vadd.f32 %v358, %v361
          %vm363 = vweird.f32 %v352
          %vm364 = vweird.f32 %v358
          %vm365 = vmor %vm363, %vm364
          %v366 = vsel %vm365, %v358, %v362
          %v367 = vand.u32 2147483647, %v352
          %vm368 = vcmp.eq.f32.partialorder %v367, 8.507059e+37
          %v369 = vand.u32 %v352, 2147483648
          %v370 = vor.u32 1.1754944e-38, %v369
          %v371 = vsel %vm368, %v370, %v366
          %v372 = vmul.f32 %v357, %v371
          %v373 = vrcp.pop %v355
          %v374 = vmul.f32 %v355, %v373
          %v375 = vsub.f32 1.0, %v374
          %v376 = vmul.f32 %v373, %v375
          %v377 = vadd.f32 %v373, %v376
          %vm378 = vweird.f32 %v355
          %vm379 = vweird.f32 %v373
          %vm380 = vmor %vm378, %vm379
          %v381 = vsel %vm380, %v373, %v377
          %v382 = vand.u32 2147483647, %v355
          %vm383 = vcmp.eq.f32.partialorder %v382, 8.507059e+37
          %v384 = vand.u32 %v355, 2147483648
          %v385 = vor.u32 1.1754944e-38, %v384
          %v386 = vsel %vm383, %v385, %v381
          %v387 = vmul.f32 %v357, %v386
          %v388 = vmul.f32 %v347, %v372
          %v389 = vmul.f32 %v349, %v387
          %390 = vst.msk [vmem:[#allocation2] sm:$0xf] %vm337, %v388
          %391 = vst.msk [vmem:[#allocation2 + $0x4] sm:$0xf] %vm337, %v389
        $region44: #{tpu_custom_call.1} parent=27 // pred_fallthru
          _
        %p392 = scmp.ge.s32.totalorder %s25, 1
        // Predicated region
        $region45: #{tpu_custom_call.1} parent=27 // pred_check
          %p393 = pneg %p392
        $region46: #{tpu_custom_call.1} parent=27 // pred_check_branch
          %395 = sbr.rel (%p393) target = $region48
        $region47: #{tpu_custom_call.1} parent=27 // pred_region
          %s396 = ssub.s32 %s25, 1
          %s397 = smul.u32 %s396, 4
          %s398 = smul.addr %s397, 4
          %s399 = scalar_lea.vmem [#allocation3], %s398
          %v400 = vld [vmem:[%s399] sm:$0xff]
          %v401 = vld [vmem:[%s399 + $0x8] sm:$0xff]
          %v402 = vld [vmem:[#allocation2] sm:$0xf]
          %v403 = vld [vmem:[#allocation2 + $0x4] sm:$0xf]
          %405 = vst [vmem:[#allocation1] ss:$2 sm:$0xff] %v400
          %v406 = vld.sshfl [vmem:[#allocation1] sm:$0xff pattern:$0x75316420]
          %v407 = vld.sshfl [vmem:[#allocation1 + $0x8] sm:$0xff pattern:$0x75316420]
          %408 = vst [vmem:[#allocation1] ss:$2 sm:$0xff] %v400
          %v409 = vld.sshfl [vmem:[#allocation1] sm:$0xff pattern:$0x75316420]
          %v410 = vld.sshfl [vmem:[#allocation1 + $0x8] sm:$0xff pattern:$0x75316420]
          %vm413 = vcmask 31744
          %v415 = vsel %vm413, %v402, 0
          %vm417 = vcmask 1043456
          %v418 = vsel %vm417, %v406, 0
          %v420 = vsel %vm417, %v407, 0
          %422 = vmatpush.msra.mxu0 0.0
          %423 = vmatpush.msra.mxu0 0.0
          %424 = vmatpush.msra.mxu0 0.0
          %425 = vmatpush.msra.mxu0 0.0
          %426 = vmatpush.msra.mxu0 0.0
          %427 = vmatpush.msra.mxu0 0.0
          %428 = vmatpush.msra.mxu0 0.0
          %429 = vmatpush.msra.mxu0 0.0
          %430 = vmatpush.msra.mxu0 0.0
          %431 = vmatpush.msra.mxu0 0.0
          %432 = vmatpush.msra.mxu0 0.0
          %433 = vmatpush.msra.mxu0 0.0
          %434 = vmatpush.msra.mxu0 0.0
          %435 = vmatpush.msra.mxu0 0.0
          %436 = vmatpush.msra.mxu0 0.0
          %437 = vmatpush.msra.mxu0 %v418
          %438 = vmatmul.f32.gmra.mxu0 %v415
          %v439 = vpop.f32.mrf.mxu0
          %v440 = vadd.f32 %v409, %v439
          %441 = vdwg.mxu0
          %442 = vmatpush.msra.mxu0 0.0
          %443 = vmatpush.msra.mxu0 0.0
          %444 = vmatpush.msra.mxu0 0.0
          %445 = vmatpush.msra.mxu0 0.0
          %446 = vmatpush.msra.mxu0 0.0
          %447 = vmatpush.msra.mxu0 0.0
          %448 = vmatpush.msra.mxu0 0.0
          %449 = vmatpush.msra.mxu0 0.0
          %450 = vmatpush.msra.mxu0 0.0
          %451 = vmatpush.msra.mxu0 0.0
          %452 = vmatpush.msra.mxu0 0.0
          %453 = vmatpush.msra.mxu0 0.0
          %454 = vmatpush.msra.mxu0 0.0
          %455 = vmatpush.msra.mxu0 0.0
          %456 = vmatpush.msra.mxu0 0.0
          %457 = vmatpush.msra.mxu0 %v420
          %458 = vmatmul.f32.gmra.mxu0 %v415
          %v459 = vpop.f32.mrf.mxu0
          %v460 = vadd.f32 %v410, %v459
          %461 = vdwg.mxu0
          %463 = vst [vmem:[#allocation1] ss:$2 sm:$0xff] %v401
          %v464 = vld.sshfl [vmem:[#allocation1] sm:$0xff pattern:$0x75316420]
          %v465 = vld.sshfl [vmem:[#allocation1 + $0x8] sm:$0xff pattern:$0x75316420]
          %466 = vst [vmem:[#allocation1] ss:$2 sm:$0xff] %v401
          %v467 = vld.sshfl [vmem:[#allocation1] sm:$0xff pattern:$0x75316420]
          %v468 = vld.sshfl [vmem:[#allocation1 + $0x8] sm:$0xff pattern:$0x75316420]
          %v472 = vsel %vm413, %v403, 0
          %v474 = vsel %vm417, %v464, 0
          %v476 = vsel %vm417, %v465, 0
          %478 = vmatpush.msra.mxu0 0.0
          %479 = vmatpush.msra.mxu0 0.0
          %480 = vmatpush.msra.mxu0 0.0
          %481 = vmatpush.msra.mxu0 0.0
          %482 = vmatpush.msra.mxu0 0.0
          %483 = vmatpush.msra.mxu0 0.0
          %484 = vmatpush.msra.mxu0 0.0
          %485 = vmatpush.msra.mxu0 0.0
          %486 = vmatpush.msra.mxu0 0.0
          %487 = vmatpush.msra.mxu0 0.0
          %488 = vmatpush.msra.mxu0 0.0
          %489 = vmatpush.msra.mxu0 0.0
          %490 = vmatpush.msra.mxu0 0.0
          %491 = vmatpush.msra.mxu0 0.0
          %492 = vmatpush.msra.mxu0 0.0
          %493 = vmatpush.msra.mxu0 %v474
          %494 = vmatmul.f32.gmra.mxu0 %v472
          %v495 = vpop.f32.mrf.mxu0
          %v496 = vadd.f32 %v467, %v495
          %497 = vdwg.mxu0
          %498 = vmatpush.msra.mxu0 0.0
          %499 = vmatpush.msra.mxu0 0.0
          %500 = vmatpush.msra.mxu0 0.0
          %501 = vmatpush.msra.mxu0 0.0
          %502 = vmatpush.msra.mxu0 0.0
          %503 = vmatpush.msra.mxu0 0.0
          %504 = vmatpush.msra.mxu0 0.0
          %505 = vmatpush.msra.mxu0 0.0
          %506 = vmatpush.msra.mxu0 0.0
          %507 = vmatpush.msra.mxu0 0.0
          %508 = vmatpush.msra.mxu0 0.0
          %509 = vmatpush.msra.mxu0 0.0
          %510 = vmatpush.msra.mxu0 0.0
          %511 = vmatpush.msra.mxu0 0.0
          %512 = vmatpush.msra.mxu0 0.0
          %513 = vmatpush.msra.mxu0 %v476
          %514 = vmatmul.f32.gmra.mxu0 %v472
          %v515 = vpop.f32.mrf.mxu0
          %v516 = vadd.f32 %v468, %v515
          %517 = vdwg.mxu0
          %v522 = vrot.slane %v460, 4
          %v523 = vrot.slane %v516, 4
          %v524 = vsel %vm417, %v440, %v522
          %v525 = vsel %vm417, %v496, %v523
          %528 = vst [vmem:[%s195] sm:$0xff] %v524
          %529 = vst [vmem:[%s195 + $0x8] sm:$0xff] %v525
        $region48: #{tpu_custom_call.1} parent=27 // pred_fallthru
          _
        %s530 = sand.u32 %s101, 1
        %s531 = scalar_lea.sflag [#allocation7], %s530
        %s532 = sand.u32 %s101, 1
        %s533 = smul.addr %s532, 16
        %s534 = scalar_lea.vmem [#allocation8], %s533
        // Predicated region
        $region49: #{tpu_custom_call.1} parent=27 // pred_check
          %p535 = pneg %p111
        $region50: #{tpu_custom_call.1} parent=27 // pred_check_branch
          %537 = sbr.rel (%p535) target = $region52
        $region51: #{tpu_custom_call.1} parent=27 // pred_region
          %s538 = ssub.s32 %s25, 1
          %p539 = scmp.gt.s32.totalorder %s538, 0
          %s540 = scalar_select %p539, %s538, 0
          %s541 = smul.u32 2, %s24
          %s542 = smul.u32 2, %s540
          %544 = vsyncadd %s531, 0
          %s545 = smul.addr %s541, 2
          %s546 = sadd.s32 %s542, %s545
          %s547 = smul.addr %s546, 4
          %s548 = scalar_lea.hbm %s2, %s547
          %s549 = sshll.u32 %s534, 4
          %s550 = int_to_ptr.vmem [resolvable:$true] %s549
          %s551 = sshll.u32 %s548, 4
          %s552 = int_to_ptr.hbm [resolvable:$true] %s551
          %557 = dma.vmem_to_hbm [thread:$0]  %s550, 256, %s552, %s531, 128, 128, 8
        $region52: #{tpu_custom_call.1} parent=27 // pred_fallthru
          _
      $region28: #{tpu_custom_call.1} parent=5 // pred_fallthru
        _
      %p558 = scmp.le.s32.totalorder 2, %s15
      // Predicated region
      $region53: #{tpu_custom_call.1} parent=5 // pred_check
        %p559 = pneg %p558
      $region54: #{tpu_custom_call.1} parent=5 // pred_check_branch
        %561 = sbr.rel (%p559) target = $region56
      $region55: #{tpu_custom_call.1} parent=5 // pred_region
        %s562 = ssub.s32 %s15, 2
        // Predicated region
        $region57: #{tpu_custom_call.1} parent=55 // pred_check
          %p563 = pneg %p117
        $region58: #{tpu_custom_call.1} parent=55 // pred_check_branch
          %565 = sbr.rel (%p563) target = $region60
        $region59: #{tpu_custom_call.1} parent=55 // pred_region
          %s566 = sand.u32 %s102, 1
          %s567 = scalar_lea.sflag [#allocation7], %s566
          %s568 = sand.u32 %s102, 1
          %s569 = smul.addr %s568, 16
          %s570 = scalar_lea.vmem [#allocation8], %s569
          %572 = dma.done %s567, 256
        $region60: #{tpu_custom_call.1} parent=55 // pred_fallthru
          _
      $region56: #{tpu_custom_call.1} parent=5 // pred_fallthru
        _
    $region6: #{tpu_custom_call.1} parent=1 // loop_footer
      %s19 = sadd.s32 1, %s15
    $region7: #{tpu_custom_call.1} parent=1 // loop_footer_branch
      %14 = sbr.rel target = $region3
    $region8: #{tpu_custom_call.1} parent=1 // loop_exit
      _
    %573 = vsyncpa [#allocation6], 1
    %s574 = scalar_lea.sflag [#allocation6], 1
    %575 = vsyncpa %s574, 1
    %576 = vsyncpa [#allocation7], 1
    %s577 = scalar_lea.sflag [#allocation7], 1
    %578 = vsyncpa %s577, 1

</llo_original>
